<compile_context>
chip_gen: v7x
topology: tpu7x:2x2x1
jax: 0.10.0
libtpu: 0.0.40
codegen_flags: <defaults>
</compile_context>

<pallas_src>
import functools

import jax
import jax.numpy as jnp
from jax import lax
from jax.experimental import pallas as pl
from jax.experimental.pallas import tpu as pltpu


# --------------------------- fused attention kernel ---------------------------

def _mha_fused_kernel(x_ref, wqkv_ref, wp_ref, bp_ref, o_ref, *,
                      num_heads, head_size, block_b, seq_len, approx_softmax):
    # x_ref   : (block_b, T, E)  bf16 activations for this batch block
    # wqkv_ref: (E, 3*H*hs)      packed [q | k | v] weights, bf16, VMEM-resident
    # wp_ref  : (H*hs, E)        output projection weight, bf16, VMEM-resident
    # bp_ref  : (1, E)           output projection bias, f32, VMEM-resident
    # o_ref   : (block_b, T, E)  bf16 output block
    H, hs = num_heads, head_size
    F = H * hs
    Bb, T = block_b, seq_len
    M = Bb * T
    E = x_ref.shape[-1]

    # (Bb, T, E) -> (M, E): leading-dim merge only (layout-preserving, no relayout).
    x = x_ref[...].reshape(M, E)

    # Fused QKV projection for all heads / all tokens in the block: one MXU call,
    # f32 accumulation, then a single hoisted bf16 cast.
    qkv = jnp.dot(x, wqkv_ref[...], preferred_element_type=jnp.float32)       # (M, 3F)
    qkv = qkv.astype(jnp.bfloat16)

    # Head-batched q/k/v: (H*Bb, T, hs).  Besides the unavoidable hs-wide lane slices
    # (hs < 128 in this toy config) everything is leading-dim stack/reshape.
    def to_heads(off):
        parts = [qkv[:, off + h * hs: off + (h + 1) * hs].reshape(Bb, T, hs)
                 for h in range(H)]
        return jnp.stack(parts, axis=0).reshape(H * Bb, T, hs)

    q = to_heads(0 * F)
    k = to_heads(1 * F)
    v = to_heads(2 * F)

    # Causal mask (tril[:T,:T] == 0 -> masked).  Large finite negative instead of -inf so
    # a fully-masked row (impossible with causal masking) could not NaN the softmax.
    row = lax.broadcasted_iota(jnp.int32, (T, T), 0)
    col = lax.broadcasted_iota(jnp.int32, (T, T), 1)
    causal = (col <= row)[None, :, :]

    scale = hs ** -0.5
    s = jnp.einsum('bqd,bkd->bqk', q, k,
                   preferred_element_type=jnp.float32) * scale                # (H*Bb, T, T)
    s = jnp.where(causal, s, -1e30)

    m = jnp.max(s, axis=-1, keepdims=True)                                    # f32 stats
    e = jnp.exp(s - m)
    p = e * pl.reciprocal(jnp.sum(e, axis=-1, keepdims=True), approx=approx_softmax)
    # TODO(synk): attention dropout omitted (inference-mode identity).

    attn = jnp.einsum('bqk,bkd->bqd', p.astype(jnp.bfloat16), v,
                      preferred_element_type=jnp.float32)                     # (H*Bb, T, hs)
    attn = attn.astype(jnp.bfloat16)

    # Output projection accumulated per head (replaces lane-granular concat + one dot).
    # wp_ref row slices are sublane-aligned (hs is a multiple of 8).
    out = jnp.broadcast_to(bp_ref[...], (M, E))                               # f32 accumulator
    for h in range(H):
        yh = attn[h * Bb:(h + 1) * Bb].reshape(M, hs)                         # leading dims only
        out = out + jnp.dot(yh, wp_ref[h * hs:(h + 1) * hs, :],
                            preferred_element_type=jnp.float32)
    # TODO(synk): output dropout omitted (inference-mode identity).

    o_ref[...] = out.reshape(Bb, T, E).astype(o_ref.dtype)


# ---------------------------------- wrappers -----------------------------------

def pack_mha_weights(wq, wk, wv, wp, bp):
    """One-time packing (weight-load time), amortized out of the per-call path.

    wq/wk/wv: (H, E, hs) -> packed (E, 3*H*hs) bf16 with column index = h*hs + d.
    wp: (H*hs, E) -> bf16.  bp: (E,) -> (1, E) f32.
    """
    H, E, hs = wq.shape

    def _cat(w):  # (H, E, hs) -> (E, H*hs)
        return jnp.transpose(w, (1, 0, 2)).reshape(E, H * hs)

    wqkv = jnp.concatenate([_cat(wq), _cat(wk), _cat(wv)], axis=-1).astype(jnp.bfloat16)
    return wqkv, wp.astype(jnp.bfloat16), bp.reshape(1, E).astype(jnp.float32)


def multi_head_attention(x, wqkv, wp, bp, *, num_heads, head_size,
                         block_b=None, approx_softmax=True):
    """x: (B, T, E); wqkv: (E, 3*H*hs) bf16; wp: (H*hs, E) bf16; bp: (1, E) f32.
    Returns (B, T, E) bf16."""
    B, T, E = x.shape
    F = num_heads * head_size

    if block_b is None:
        # Keep >= 2 grid steps when B >= 2 (both v7x TensorCores get work) while pushing
        # the per-step token count (MXU M dim) toward 128.
        block_b = max(1, min(B // 2, max(1, 128 // T)))
        while block_b > 1 and B % block_b:
            block_b -= 1
    if B % block_b:
        raise ValueError(f"batch {B} not divisible by block_b {block_b}")

    x = x.astype(jnp.bfloat16)   # halve input DMA; no per-step in-kernel cast

    kernel = functools.partial(
        _mha_fused_kernel, num_heads=num_heads, head_size=head_size,
        block_b=block_b, seq_len=T, approx_softmax=approx_softmax)

    return pl.pallas_call(
        kernel,
        out_shape=jax.ShapeDtypeStruct((B, T, E), jnp.bfloat16),
        grid_spec=pltpu.PrefetchScalarGridSpec(
            num_scalar_prefetch=0,
            grid=(B // block_b,),
            in_specs=[
                # activations: one batch block per step
                pl.BlockSpec((block_b, T, E), lambda b: (b, 0, 0)),
                # weights: full arrays, constant index -> VMEM-resident, single-buffered
                pl.BlockSpec((E, 3 * F), lambda b: (0, 0),
                             pipeline_mode=pl.Buffered(1)),
                pl.BlockSpec((F, E), lambda b: (0, 0),
                             pipeline_mode=pl.Buffered(1)),
                pl.BlockSpec((1, E), lambda b: (0, 0),
                             pipeline_mode=pl.Buffered(1)),
            ],
            out_specs=pl.BlockSpec((block_b, T, E), lambda b: (b, 0, 0)),
        ),
        compiler_params=pltpu.CompilerParams(
            dimension_semantics=("parallel",)),
    )(x, wqkv, wp, bp)


# --------------------------------- reference ----------------------------------

def _reference(x, wq, wk, wv, wp, bp):
    B, T, E = x.shape
    H, _, hs = wq.shape
    outs = []
    for h in range(H):
        q = x @ wq[h]
        k = x @ wk[h]
        v = x @ wv[h]
        scores = (q @ jnp.swapaxes(k, -2, -1)) * (hs ** -0.5)
        mask = jnp.tril(jnp.ones((T, T)))
        scores = jnp.where(mask == 0, -jnp.inf, scores)
        attn = jax.nn.softmax(scores, axis=-1)
        outs.append(attn @ v)
    concat = jnp.concatenate(outs, axis=-1)
    return concat @ wp + bp


# ----------------------------------- main --------------------------------------

if __name__ == "__main__":
    embed_size = 32
    num_heads = 4
    head_size = 8
    block_size = 8      # max sequence length (tril buffer size in the PyTorch module)
    seq_len = 8
    batch = 2
    # dropout = 0.0     # identity in this kernel (inference mode)

    assert seq_len <= block_size

    key = jax.random.PRNGKey(0)
    kx, kq, kk, kv, kw, kb = jax.random.split(key, 6)

    x = jax.random.normal(kx, (batch, seq_len, embed_size), dtype=jnp.float32)
    # stacked per-head weights (H, E, hs); equivalent to nn.Linear(E, hs, bias=False).weight.T
    scale = (1.0 / embed_size) ** 0.5
    wq = jax.random.uniform(kq, (num_heads, embed_size, head_size),
                            minval=-scale, maxval=scale, dtype=jnp.float32)
    wk = jax.random.uniform(kk, (num_heads, embed_size, head_size),
                            minval=-scale, maxval=scale, dtype=jnp.float32)
    wv = jax.random.uniform(kv, (num_heads, embed_size, head_size),
                            minval=-scale, maxval=scale, dtype=jnp.float32)
    fan_in = num_heads * head_size
    pscale = (1.0 / fan_in) ** 0.5
    wp = jax.random.uniform(kw, (fan_in, embed_size),
                            minval=-pscale, maxval=pscale, dtype=jnp.float32)
    bp = jax.random.uniform(kb, (embed_size,),
                            minval=-pscale, maxval=pscale, dtype=jnp.float32)

    # One-time weight packing (amortized out of the per-call path).
    wqkv_p, wp_p, bp_p = jax.block_until_ready(pack_mha_weights(wq, wk, wv, wp, bp))

    out = multi_head_attention(x, wqkv_p, wp_p, bp_p,
                               num_heads=num_heads, head_size=head_size)
    out = jax.block_until_ready(out)

    ref = _reference(x, wq, wk, wv, wp, bp)
    assert out.shape == (batch, seq_len, embed_size)
    assert out.dtype == jnp.bfloat16
    # Kernel uses bf16 MXU operands / bf16 output with f32 accumulation and f32 softmax
    # stats -> compare against the f32 reference with a bf16-appropriate tolerance.
    assert jnp.allclose(out.astype(jnp.float32), ref, atol=5e-2, rtol=5e-2), \
        "mismatch vs reference"

    print("KERNEL_OK")
</pallas_src>

<mosaic_0001>
module attributes {stable_mosaic.version = 11 : i64} {
  func.func @_mha_fused_kernel(%arg0: i32, %arg1: memref<1x8x32xbf16, #tpu.memory_space<vmem>>, %arg2: memref<32x96xbf16, #tpu.memory_space<vmem>>, %arg3: memref<32x32xbf16, #tpu.memory_space<vmem>>, %arg4: memref<1x32xf32, #tpu.memory_space<vmem>>, %arg5: memref<1x8x32xbf16, #tpu.memory_space<vmem>>) attributes {dimension_semantics = [#tpu.dimension_semantics<parallel>], iteration_bounds = array<i64: 2>, scalar_prefetch = 0 : i64, scratch_operands = 0 : i64, tpu.core_type = #tpu.core_type<tc>, window_params = [{transform_indices = @transform_0, window_bounds = array<i64: 1, 8, 32>}, {pipeline_mode = #tpu.pipeline_mode<synchronous>, transform_indices = @transform_1, window_bounds = array<i64: 32, 96>}, {pipeline_mode = #tpu.pipeline_mode<synchronous>, transform_indices = @transform_2, window_bounds = array<i64: 32, 32>}, {pipeline_mode = #tpu.pipeline_mode<synchronous>, transform_indices = @transform_3, window_bounds = array<i64: 1, 32>}, {transform_indices = @transform_4, window_bounds = array<i64: 1, 8, 32>}]} {
    %c0 = arith.constant 0 : index
    %c0_0 = arith.constant 0 : index
    %c0_1 = arith.constant 0 : index
    %0 = vector.load %arg1[%c0, %c0_0, %c0_1] : memref<1x8x32xbf16, #tpu.memory_space<vmem>>, vector<1x8x32xbf16>
    %1 = vector.shape_cast %0 : vector<1x8x32xbf16> to vector<8x32xbf16>
    %c0_2 = arith.constant 0 : index
    %c0_3 = arith.constant 0 : index
    %2 = vector.load %arg2[%c0_2, %c0_3] : memref<32x96xbf16, #tpu.memory_space<vmem>>, vector<32x96xbf16>
    %cst = arith.constant dense<0.000000e+00> : vector<8x96xf32>
    %3 = tpu.matmul %1, %2, %cst {dimension_numbers = #tpu.dot_dimension_numbers<[1], [0], [0], [1], [0, 0, 1, 1], [], []>} : vector<8x32xbf16>, vector<32x96xbf16>, vector<8x96xf32> -> vector<8x96xf32>
    %4 = arith.truncf %3 : vector<8x96xf32> to vector<8x96xbf16>
    %5 = vector.extract_strided_slice %4 {offsets = [0, 0], sizes = [8, 8], strides = [1, 1]} : vector<8x96xbf16> to vector<8x8xbf16>
    %6 = vector.shape_cast %5 : vector<8x8xbf16> to vector<1x8x8xbf16>
    %7 = vector.extract_strided_slice %4 {offsets = [0, 8], sizes = [8, 8], strides = [1, 1]} : vector<8x96xbf16> to vector<8x8xbf16>
    %8 = vector.shape_cast %7 : vector<8x8xbf16> to vector<1x8x8xbf16>
    %9 = vector.extract_strided_slice %4 {offsets = [0, 16], sizes = [8, 8], strides = [1, 1]} : vector<8x96xbf16> to vector<8x8xbf16>
    %10 = vector.shape_cast %9 : vector<8x8xbf16> to vector<1x8x8xbf16>
    %11 = vector.extract_strided_slice %4 {offsets = [0, 24], sizes = [8, 8], strides = [1, 1]} : vector<8x96xbf16> to vector<8x8xbf16>
    %12 = vector.shape_cast %11 : vector<8x8xbf16> to vector<1x8x8xbf16>
    %13 = vector.shape_cast %6 : vector<1x8x8xbf16> to vector<1x1x8x8xbf16>
    %14 = vector.shape_cast %8 : vector<1x8x8xbf16> to vector<1x1x8x8xbf16>
    %15 = vector.shape_cast %10 : vector<1x8x8xbf16> to vector<1x1x8x8xbf16>
    %16 = vector.shape_cast %12 : vector<1x8x8xbf16> to vector<1x1x8x8xbf16>
    %17 = tpu.concatenate %13, %14, %15, %16 in 0 : vector<1x1x8x8xbf16>, vector<1x1x8x8xbf16>, vector<1x1x8x8xbf16>, vector<1x1x8x8xbf16> -> vector<4x1x8x8xbf16>
    %18 = vector.shape_cast %17 : vector<4x1x8x8xbf16> to vector<4x8x8xbf16>
    %19 = vector.extract_strided_slice %4 {offsets = [0, 32], sizes = [8, 8], strides = [1, 1]} : vector<8x96xbf16> to vector<8x8xbf16>
    %20 = vector.shape_cast %19 : vector<8x8xbf16> to vector<1x8x8xbf16>
    %21 = vector.extract_strided_slice %4 {offsets = [0, 40], sizes = [8, 8], strides = [1, 1]} : vector<8x96xbf16> to vector<8x8xbf16>
    %22 = vector.shape_cast %21 : vector<8x8xbf16> to vector<1x8x8xbf16>
    %23 = vector.extract_strided_slice %4 {offsets = [0, 48], sizes = [8, 8], strides = [1, 1]} : vector<8x96xbf16> to vector<8x8xbf16>
    %24 = vector.shape_cast %23 : vector<8x8xbf16> to vector<1x8x8xbf16>
    %25 = vector.extract_strided_slice %4 {offsets = [0, 56], sizes = [8, 8], strides = [1, 1]} : vector<8x96xbf16> to vector<8x8xbf16>
    %26 = vector.shape_cast %25 : vector<8x8xbf16> to vector<1x8x8xbf16>
    %27 = vector.shape_cast %20 : vector<1x8x8xbf16> to vector<1x1x8x8xbf16>
    %28 = vector.shape_cast %22 : vector<1x8x8xbf16> to vector<1x1x8x8xbf16>
    %29 = vector.shape_cast %24 : vector<1x8x8xbf16> to vector<1x1x8x8xbf16>
    %30 = vector.shape_cast %26 : vector<1x8x8xbf16> to vector<1x1x8x8xbf16>
    %31 = tpu.concatenate %27, %28, %29, %30 in 0 : vector<1x1x8x8xbf16>, vector<1x1x8x8xbf16>, vector<1x1x8x8xbf16>, vector<1x1x8x8xbf16> -> vector<4x1x8x8xbf16>
    %32 = vector.shape_cast %31 : vector<4x1x8x8xbf16> to vector<4x8x8xbf16>
    %33 = vector.extract_strided_slice %4 {offsets = [0, 64], sizes = [8, 8], strides = [1, 1]} : vector<8x96xbf16> to vector<8x8xbf16>
    %34 = vector.shape_cast %33 : vector<8x8xbf16> to vector<1x8x8xbf16>
    %35 = vector.extract_strided_slice %4 {offsets = [0, 72], sizes = [8, 8], strides = [1, 1]} : vector<8x96xbf16> to vector<8x8xbf16>
    %36 = vector.shape_cast %35 : vector<8x8xbf16> to vector<1x8x8xbf16>
    %37 = vector.extract_strided_slice %4 {offsets = [0, 80], sizes = [8, 8], strides = [1, 1]} : vector<8x96xbf16> to vector<8x8xbf16>
    %38 = vector.shape_cast %37 : vector<8x8xbf16> to vector<1x8x8xbf16>
    %39 = vector.extract_strided_slice %4 {offsets = [0, 88], sizes = [8, 8], strides = [1, 1]} : vector<8x96xbf16> to vector<8x8xbf16>
    %40 = vector.shape_cast %39 : vector<8x8xbf16> to vector<1x8x8xbf16>
    %41 = vector.shape_cast %34 : vector<1x8x8xbf16> to vector<1x1x8x8xbf16>
    %42 = vector.shape_cast %36 : vector<1x8x8xbf16> to vector<1x1x8x8xbf16>
    %43 = vector.shape_cast %38 : vector<1x8x8xbf16> to vector<1x1x8x8xbf16>
    %44 = vector.shape_cast %40 : vector<1x8x8xbf16> to vector<1x1x8x8xbf16>
    %45 = tpu.concatenate %41, %42, %43, %44 in 0 : vector<1x1x8x8xbf16>, vector<1x1x8x8xbf16>, vector<1x1x8x8xbf16>, vector<1x1x8x8xbf16> -> vector<4x1x8x8xbf16>
    %46 = vector.shape_cast %45 : vector<4x1x8x8xbf16> to vector<4x8x8xbf16>
    %47 = tpu.iota {dimensions = array<i32: 0>} : vector<8x8xi32>
    %48 = tpu.iota {dimensions = array<i32: 1>} : vector<8x8xi32>
    %49 = arith.cmpi sle, %48, %47 : vector<8x8xi32>
    %50 = vector.shape_cast %49 : vector<8x8xi1> to vector<1x8x8xi1>
    "tpu.trace_start"() <{level = 10 : i32, message = "bqd,bkd->bqk"}> : () -> ()
    %cst_4 = arith.constant dense<0.000000e+00> : vector<4x8x8xf32>
    %51 = tpu.matmul %18, %32, %cst_4 {dimension_numbers = #tpu.dot_dimension_numbers<[2], [2], [1], [1], [0, 0, 0, 1, 1, 1], [0], [0]>} : vector<4x8x8xbf16>, vector<4x8x8xbf16>, vector<4x8x8xf32> -> vector<4x8x8xf32>
    "tpu.trace_stop"() : () -> ()
    %cst_5 = arith.constant 0.353553385 : f32
    %52 = vector.broadcast %cst_5 : f32 to vector<4x8x8xf32>
    %53 = arith.mulf %51, %52 : vector<4x8x8xf32>
    %cst_6 = arith.constant -1.000000e+30 : f32
    %54 = vector.shape_cast %50 : vector<1x8x8xi1> to vector<1x8x8xi1>
    %55 = vector.broadcast %54 : vector<1x8x8xi1> to vector<4x8x8xi1>
    %56 = vector.broadcast %cst_6 : f32 to vector<4x8x8xf32>
    %57 = arith.select %55, %53, %56 : vector<4x8x8xi1>, vector<4x8x8xf32>
    %cst_7 = arith.constant dense<0xFF800000> : vector<4x8xf32>
    %58 = vector.multi_reduction <maximumf>, %57, %cst_7 [2] : vector<4x8x8xf32> to vector<4x8xf32>
    %59 = vector.shape_cast %58 : vector<4x8xf32> to vector<4x8x1xf32>
    %60 = vector.broadcast %59 : vector<4x8x1xf32> to vector<4x8x8xf32>
    %61 = arith.subf %57, %60 : vector<4x8x8xf32>
    %62 = math.exp %61 : vector<4x8x8xf32>
    %cst_8 = arith.constant dense<0.000000e+00> : vector<4x8xf32>
    %63 = vector.multi_reduction <add>, %62, %cst_8 [2] : vector<4x8x8xf32> to vector<4x8xf32>
    %64 = vector.shape_cast %63 : vector<4x8xf32> to vector<4x8x1xf32>
    %65 = tpu.reciprocal %64 {approx = true} : vector<4x8x1xf32> -> vector<4x8x1xf32>
    %66 = vector.broadcast %65 : vector<4x8x1xf32> to vector<4x8x8xf32>
    %67 = arith.mulf %62, %66 : vector<4x8x8xf32>
    %68 = arith.truncf %67 : vector<4x8x8xf32> to vector<4x8x8xbf16>
    "tpu.trace_start"() <{level = 10 : i32, message = "bqk,bkd->bqd"}> : () -> ()
    %cst_9 = arith.constant dense<0.000000e+00> : vector<4x8x8xf32>
    %69 = tpu.matmul %68, %46, %cst_9 {dimension_numbers = #tpu.dot_dimension_numbers<[2], [1], [1], [2], [0, 0, 0, 1, 1, 2], [0], [0]>} : vector<4x8x8xbf16>, vector<4x8x8xbf16>, vector<4x8x8xf32> -> vector<4x8x8xf32>
    "tpu.trace_stop"() : () -> ()
    %70 = arith.truncf %69 : vector<4x8x8xf32> to vector<4x8x8xbf16>
    %c0_10 = arith.constant 0 : index
    %c0_11 = arith.constant 0 : index
    %71 = vector.load %arg4[%c0_10, %c0_11] : memref<1x32xf32, #tpu.memory_space<vmem>>, vector<1x32xf32>
    %72 = vector.shape_cast %71 : vector<1x32xf32> to vector<1x32xf32>
    %73 = vector.broadcast %72 : vector<1x32xf32> to vector<8x32xf32>
    %74 = vector.extract_strided_slice %70 {offsets = [0, 0, 0], sizes = [1, 8, 8], strides = [1, 1, 1]} : vector<4x8x8xbf16> to vector<1x8x8xbf16>
    %75 = vector.shape_cast %74 : vector<1x8x8xbf16> to vector<8x8xbf16>
    %c0_12 = arith.constant 0 : index
    %c0_13 = arith.constant 0 : index
    %76 = vector.load %arg3[%c0_12, %c0_13] : memref<32x32xbf16, #tpu.memory_space<vmem>>, vector<8x32xbf16>
    %cst_14 = arith.constant dense<0.000000e+00> : vector<8x32xf32>
    %77 = tpu.matmul %75, %76, %cst_14 {dimension_numbers = #tpu.dot_dimension_numbers<[1], [0], [0], [1], [0, 0, 1, 1], [], []>} : vector<8x8xbf16>, vector<8x32xbf16>, vector<8x32xf32> -> vector<8x32xf32>
    %78 = arith.addf %73, %77 : vector<8x32xf32>
    %79 = vector.extract_strided_slice %70 {offsets = [1, 0, 0], sizes = [1, 8, 8], strides = [1, 1, 1]} : vector<4x8x8xbf16> to vector<1x8x8xbf16>
    %80 = vector.shape_cast %79 : vector<1x8x8xbf16> to vector<8x8xbf16>
    %c8 = arith.constant 8 : index
    %c0_15 = arith.constant 0 : index
    %81 = vector.load %arg3[%c8, %c0_15] : memref<32x32xbf16, #tpu.memory_space<vmem>>, vector<8x32xbf16>
    %cst_16 = arith.constant dense<0.000000e+00> : vector<8x32xf32>
    %82 = tpu.matmul %80, %81, %cst_16 {dimension_numbers = #tpu.dot_dimension_numbers<[1], [0], [0], [1], [0, 0, 1, 1], [], []>} : vector<8x8xbf16>, vector<8x32xbf16>, vector<8x32xf32> -> vector<8x32xf32>
    %83 = arith.addf %78, %82 : vector<8x32xf32>
    %84 = vector.extract_strided_slice %70 {offsets = [2, 0, 0], sizes = [1, 8, 8], strides = [1, 1, 1]} : vector<4x8x8xbf16> to vector<1x8x8xbf16>
    %85 = vector.shape_cast %84 : vector<1x8x8xbf16> to vector<8x8xbf16>
    %c16 = arith.constant 16 : index
    %c0_17 = arith.constant 0 : index
    %86 = vector.load %arg3[%c16, %c0_17] : memref<32x32xbf16, #tpu.memory_space<vmem>>, vector<8x32xbf16>
    %cst_18 = arith.constant dense<0.000000e+00> : vector<8x32xf32>
    %87 = tpu.matmul %85, %86, %cst_18 {dimension_numbers = #tpu.dot_dimension_numbers<[1], [0], [0], [1], [0, 0, 1, 1], [], []>} : vector<8x8xbf16>, vector<8x32xbf16>, vector<8x32xf32> -> vector<8x32xf32>
    %88 = arith.addf %83, %87 : vector<8x32xf32>
    %89 = vector.extract_strided_slice %70 {offsets = [3, 0, 0], sizes = [1, 8, 8], strides = [1, 1, 1]} : vector<4x8x8xbf16> to vector<1x8x8xbf16>
    %90 = vector.shape_cast %89 : vector<1x8x8xbf16> to vector<8x8xbf16>
    %c24 = arith.constant 24 : index
    %c0_19 = arith.constant 0 : index
    %91 = vector.load %arg3[%c24, %c0_19] : memref<32x32xbf16, #tpu.memory_space<vmem>>, vector<8x32xbf16>
    %cst_20 = arith.constant dense<0.000000e+00> : vector<8x32xf32>
    %92 = tpu.matmul %90, %91, %cst_20 {dimension_numbers = #tpu.dot_dimension_numbers<[1], [0], [0], [1], [0, 0, 1, 1], [], []>} : vector<8x8xbf16>, vector<8x32xbf16>, vector<8x32xf32> -> vector<8x32xf32>
    %93 = arith.addf %88, %92 : vector<8x32xf32>
    %94 = vector.shape_cast %93 : vector<8x32xf32> to vector<1x8x32xf32>
    %95 = arith.truncf %94 : vector<1x8x32xf32> to vector<1x8x32xbf16>
    %c0_21 = arith.constant 0 : index
    %c0_22 = arith.constant 0 : index
    %c0_23 = arith.constant 0 : index
    %96 = vector.load %arg5[%c0_21, %c0_22, %c0_23] : memref<1x8x32xbf16, #tpu.memory_space<vmem>>, vector<1x8x32xbf16>
    tpu.vector_store %arg5[%c0_21, %c0_22, %c0_23], %95 {strides = array<i32>} : memref<1x8x32xbf16, #tpu.memory_space<vmem>>, vector<1x8x32xbf16>,
    return
  }
  func.func @transform_0(%arg0: i32) -> (i32, i32, i32) {
    %c0_i32 = arith.constant 0 : i32
    %c0_i32_0 = arith.constant 0 : i32
    %c0_i32_1 = arith.constant 0 : i32
    return %arg0, %c0_i32, %c0_i32_0 : i32, i32, i32
  }
  func.func @transform_1(%arg0: i32) -> (i32, i32) {
    %c0_i32 = arith.constant 0 : i32
    %c0_i32_0 = arith.constant 0 : i32
    %c0_i32_1 = arith.constant 0 : i32
    return %c0_i32, %c0_i32_0 : i32, i32
  }
  func.func @transform_2(%arg0: i32) -> (i32, i32) {
    %c0_i32 = arith.constant 0 : i32
    %c0_i32_0 = arith.constant 0 : i32
    %c0_i32_1 = arith.constant 0 : i32
    return %c0_i32, %c0_i32_0 : i32, i32
  }
  func.func @transform_3(%arg0: i32) -> (i32, i32) {
    %c0_i32 = arith.constant 0 : i32
    %c0_i32_0 = arith.constant 0 : i32
    %c0_i32_1 = arith.constant 0 : i32
    return %c0_i32, %c0_i32_0 : i32, i32
  }
  func.func @transform_4(%arg0: i32) -> (i32, i32, i32) {
    %c0_i32 = arith.constant 0 : i32
    %c0_i32_0 = arith.constant 0 : i32
    %c0_i32_1 = arith.constant 0 : i32
    return %arg0, %c0_i32, %c0_i32_0 : i32, i32, i32
  }
}

</mosaic_0001>

<llo_original>
// kernel: tpu_custom_call.1
$region0: #{tpu_custom_call.1}
  #allocation0 [shape = 'u32[]', space=smem, size = 0x4, offset = 0x4, fixed_abs, tag = 'smem constant byte address 0x4 - core index']
  #allocation1 [shape = 'u32[144,128]{1,0:T(1,128)}', space=vmem, size = 0x12000, scoped, tag = 'internal scratch']
  %s0 = inlined_call_operand.hbm [shape: bf16[2,8,32], index: 0, kind: input, shape index: {}]
  %s1 = inlined_call_operand.hbm [shape: bf16[32,96], index: 1, kind: input, shape index: {}]
  %s2 = inlined_call_operand.hbm [shape: bf16[32,32], index: 2, kind: input, shape index: {}]
  %s3 = inlined_call_operand.vmem [shape: f32[1,32], index: 3, kind: input, shape index: {}]
  %s4 = inlined_call_operand.hbm [shape: bf16[2,8,32], index: 4, kind: output, shape index: {}]
  %s5 = sld [smem:[#allocation0]]
  $region61: #{tpu_custom_call.1} parent=0
    _
  %s7 = ssub.s32 1, %s5
  %s8 = scalar_select 0, %s7, %s5
  $region1: #{tpu_custom_call.1} parent=0
    #allocation2 [shape = 'u8[4096]{0}', space=vmem, size = 0x1000, scoped, tag = 'input window, operand 0']
    #allocation3 [shape = 's32[2]{0}', space=sflag, size = 0x8, scoped, tag = 'scoped memory for tpu_custom_call.1']
    #allocation4 [shape = 's32[2]{0}', space=sflag, size = 0x8, scoped, tag = 'scoped memory for tpu_custom_call.1']
    #allocation5 [shape = 'u8[8192]{0}', space=vmem, size = 0x2000, scoped, tag = 'input window, operand 1, single buffered']
    #allocation6 [shape = 's32[1]{0}', space=sflag, size = 0x4, scoped, tag = 'scoped memory for tpu_custom_call.1']
    #allocation7 [shape = 'u8[8192]{0}', space=vmem, size = 0x2000, scoped, tag = 'input window, operand 2, single buffered']
    #allocation8 [shape = 'u8[4096]{0}', space=vmem, size = 0x1000, scoped, tag = 'output window, operand 0']
    %9 = vsyncpa [#allocation3], 0
    %s10 = scalar_lea.sflag [#allocation3], 1
    %11 = vsyncpa %s10, 0
    %12 = vsyncpa [#allocation6], 0
    %13 = vsyncpa [#allocation4], 0
    %s14 = scalar_lea.sflag [#allocation4], 1
    %15 = vsyncpa %s14, 0
    loop: start=0, step=1, limit=4
    $region2: #{tpu_custom_call.1} parent=1 // loop_pre_header
      _
    $region3: #{tpu_custom_call.1} parent=1 // loop_header
      %s17 = sphi 0, %s21
      %p18 = scmp.ge.s32.totalorder %s17, 4
      %s27 = sphi 0, %s29
      %s30 = sphi 0, %s27
      %s31 = sphi 0, %s30
      %s47 = sphi 0, %s31
      %s51 = sphi 0, %s51
      %s53 = sphi 0, %s51
      %s54 = sphi 0, %s53
      %s68 = sphi 0, %s54
      %s72 = sphi 0, %s72
      %s74 = sphi 0, %s72
      %s75 = sphi 0, %s74
      %s89 = sphi 0, %s75
      %s93 = sphi 0, %s93
      %s95 = sphi 0, %s93
      %s96 = sphi 0, %s95
      %s110 = sphi 0, %s96
      %s116 = sphi 0, %s118
      %s119 = sphi 0, %s116
      %s120 = sphi 0, %s119
      %s136 = sphi 0, %s120
    $region4: #{tpu_custom_call.1} parent=1 // loop_header_branch
      %20 = sbr.rel (%p18) target = $region8
    $region5: #{tpu_custom_call.1} parent=1 // loop_body
      %s22 = ssub.s32 %s17, 1
      %s23 = ssub.s32 %s17, 2
      %s24 = sadd.s32 %s17, 1
      %s25 = ssub.s32 %s17, %s24
      %p26 = scmp.eq.s32.totalorder %s25, 0
      %s28 = sadd.s32 %s27, 1
      %s29 = scalar_select %p26, %s27, %s28
      %p32 = pneg %p26
      %p33 = scmp.eq.s32.totalorder %s17, 1
      %p34 = por %p32, %p33
      %p35 = scmp.ne.s32.totalorder %s27, %s30
      %p36 = scmp.eq.s32.totalorder %s17, 0
      %p37 = por %p35, %p36
      %p38 = scmp.ne.s32.totalorder %s27, %s30
      %p39 = scmp.eq.s32.totalorder %s22, 1
      %p40 = por %p38, %p39
      %p41 = scmp.ne.s32.totalorder %s30, %s31
      %p42 = scmp.eq.s32.totalorder %s22, 0
      %p43 = por %p41, %p42
      %p44 = scmp.ne.s32.totalorder %s30, %s31
      %p45 = scmp.eq.s32.totalorder %s23, 1
      %p46 = por %p44, %p45
      %p48 = scmp.ne.s32.totalorder %s31, %s47
      %p49 = scmp.eq.s32.totalorder %s23, 0
      %p50 = por %p48, %p49
      %s52 = sadd.s32 %s51, 1
      %p55 = scmp.eq.s32.totalorder %s17, 1
      %p56 = scmp.ne.s32.totalorder %s51, %s53
      %p57 = scmp.eq.s32.totalorder %s17, 0
      %p58 = por %p56, %p57
      %p59 = scmp.ne.s32.totalorder %s51, %s53
      %p60 = scmp.eq.s32.totalorder %s22, 1
      %p61 = por %p59, %p60
      %p62 = scmp.ne.s32.totalorder %s53, %s54
      %p63 = scmp.eq.s32.totalorder %s22, 0
      %p64 = por %p62, %p63
      %p65 = scmp.ne.s32.totalorder %s53, %s54
      %p66 = scmp.eq.s32.totalorder %s23, 1
      %p67 = por %p65, %p66
      %p69 = scmp.ne.s32.totalorder %s54, %s68
      %p70 = scmp.eq.s32.totalorder %s23, 0
      %p71 = por %p69, %p70
      %s73 = sadd.s32 %s72, 1
      %p76 = scmp.eq.s32.totalorder %s17, 1
      %p77 = scmp.ne.s32.totalorder %s72, %s74
      %p78 = scmp.eq.s32.totalorder %s17, 0
      %p79 = por %p77, %p78
      %p80 = scmp.ne.s32.totalorder %s72, %s74
      %p81 = scmp.eq.s32.totalorder %s22, 1
      %p82 = por %p80, %p81
      %p83 = scmp.ne.s32.totalorder %s74, %s75
      %p84 = scmp.eq.s32.totalorder %s22, 0
      %p85 = por %p83, %p84
      %p86 = scmp.ne.s32.totalorder %s74, %s75
      %p87 = scmp.eq.s32.totalorder %s23, 1
      %p88 = por %p86, %p87
      %p90 = scmp.ne.s32.totalorder %s75, %s89
      %p91 = scmp.eq.s32.totalorder %s23, 0
      %p92 = por %p90, %p91
      %s94 = sadd.s32 %s93, 1
      %p97 = scmp.eq.s32.totalorder %s17, 1
      %p98 = scmp.ne.s32.totalorder %s93, %s95
      %p99 = scmp.eq.s32.totalorder %s17, 0
      %p100 = por %p98, %p99
      %p101 = scmp.ne.s32.totalorder %s93, %s95
      %p102 = scmp.eq.s32.totalorder %s22, 1
      %p103 = por %p101, %p102
      %p104 = scmp.ne.s32.totalorder %s95, %s96
      %p105 = scmp.eq.s32.totalorder %s22, 0
      %p106 = por %p104, %p105
      %p107 = scmp.ne.s32.totalorder %s95, %s96
      %p108 = scmp.eq.s32.totalorder %s23, 1
      %p109 = por %p107, %p108
      %p111 = scmp.ne.s32.totalorder %s96, %s110
      %p112 = scmp.eq.s32.totalorder %s23, 0
      %p113 = por %p111, %p112
      %s114 = ssub.s32 %s17, %s24
      %p115 = scmp.eq.s32.totalorder %s114, 0
      %s117 = sadd.s32 %s116, 1
      %s118 = scalar_select %p115, %s116, %s117
      %p121 = pneg %p115
      %p122 = scmp.eq.s32.totalorder %s17, 1
      %p123 = por %p121, %p122
      %p124 = scmp.ne.s32.totalorder %s116, %s119
      %p125 = scmp.eq.s32.totalorder %s17, 0
      %p126 = por %p124, %p125
      %p127 = scmp.ne.s32.totalorder %s116, %s119
      %p128 = scmp.eq.s32.totalorder %s22, 1
      %p129 = por %p127, %p128
      %p130 = scmp.ne.s32.totalorder %s119, %s120
      %p131 = scmp.eq.s32.totalorder %s22, 0
      %p132 = por %p130, %p131
      %p133 = scmp.ne.s32.totalorder %s119, %s120
      %p134 = scmp.eq.s32.totalorder %s23, 1
      %p135 = por %p133, %p134
      %p137 = scmp.ne.s32.totalorder %s120, %s136
      %p138 = scmp.eq.s32.totalorder %s23, 0
      %p139 = por %p137, %p138
      %p140 = scmp.le.s32.totalorder 1, %s17
      %p141 = scmp.lt.s32.totalorder %s17, 3
      %p142 = pnand %p140, %p141
      %p143 = pneg %p142
      // Predicated region
      $region9: #{tpu_custom_call.1} parent=5 // pred_check
        _
      $region10: #{tpu_custom_call.1} parent=5 // pred_check_branch
        %145 = sbr.rel (%p142) target = $region12
      $region11: #{tpu_custom_call.1} parent=5 // pred_region
        %s146 = ssub.s32 %s17, 1
        // Predicated region
        $region13: #{tpu_custom_call.1} parent=11 // pred_check
          %p147 = pneg %p64
        $region14: #{tpu_custom_call.1} parent=11 // pred_check_branch
          %149 = sbr.rel (%p147) target = $region16
        $region15: #{tpu_custom_call.1} parent=11 // pred_region
          %s151 = ssub.s32 256, 256
          %152 = vsyncadd [#allocation6], %s151
          %s153 = sshll.u32 [#allocation5], 4
          %s154 = int_to_ptr.vmem [resolvable:$true] %s153
          %159 = dma.hbm_to_vmem [thread:$0]  %s1, 256, %s154, [#allocation6], 64, 64, 4
        $region16: #{tpu_custom_call.1} parent=11 // pred_fallthru
          _
        // Predicated region
        $region17: #{tpu_custom_call.1} parent=11 // pred_check
          %p160 = pneg %p85
        $region18: #{tpu_custom_call.1} parent=11 // pred_check_branch
          %162 = sbr.rel (%p160) target = $region20
        $region19: #{tpu_custom_call.1} parent=11 // pred_region
          %s164 = ssub.s32 256, 256
          %165 = vsyncadd [#allocation6], %s164
          %s166 = sshll.u32 [#allocation7], 4
          %s167 = int_to_ptr.vmem [resolvable:$true] %s166
          %172 = dma.hbm_to_vmem [thread:$0]  %s2, 256, %s167, [#allocation6], 64, 64, 4
        $region20: #{tpu_custom_call.1} parent=11 // pred_fallthru
          _
        // Predicated region
        $region21: #{tpu_custom_call.1} parent=11 // pred_check
          %p173 = pneg %p106
        $region22: #{tpu_custom_call.1} parent=11 // pred_check_branch
          %175 = sbr.rel (%p173) target = $region24
        $region23: #{tpu_custom_call.1} parent=11 // pred_region
          _
        $region24: #{tpu_custom_call.1} parent=11 // pred_fallthru
          _
      $region12: #{tpu_custom_call.1} parent=5 // pred_fallthru
        _
      %p176 = scmp.lt.s32.totalorder %s17, 2
      // Predicated region
      $region25: #{tpu_custom_call.1} parent=5 // pred_check
        %p177 = pneg %p176
      $region26: #{tpu_custom_call.1} parent=5 // pred_check_branch
        %179 = sbr.rel (%p177) target = $region28
      $region27: #{tpu_custom_call.1} parent=5 // pred_region
        // Predicated region
        $region29: #{tpu_custom_call.1} parent=27 // pred_check
          %p180 = pneg %p37
        $region30: #{tpu_custom_call.1} parent=27 // pred_check_branch
          %182 = sbr.rel (%p180) target = $region32
        $region31: #{tpu_custom_call.1} parent=27 // pred_region
          %s183 = sand.u32 %s27, 1
          %s184 = scalar_lea.sflag [#allocation3], %s183
          %s185 = sand.u32 %s27, 1
          %s186 = smul.addr %s185, 4
          %s187 = scalar_lea.vmem [#allocation2], %s186
          %s189 = ssub.s32 64, 64
          %190 = vsyncadd %s184, %s189
          %s191 = smul.addr %s17, 64
          %s192 = scalar_lea.hbm %s0, %s191
          %s194 = sshll.u32 %s187, 4
          %s195 = int_to_ptr.vmem [resolvable:$true] %s194
          %197 = dma.hbm_to_vmem [thread:$0]  %s192, 64, %s195, %s184
        $region32: #{tpu_custom_call.1} parent=27 // pred_fallthru
          _
      $region28: #{tpu_custom_call.1} parent=5 // pred_fallthru
        _
      %p198 = scmp.le.s32.totalorder 1, %s17
      %p199 = scmp.lt.s32.totalorder %s17, 3
      %p200 = pnand %p198, %p199
      %p201 = pneg %p200
      // Predicated region
      $region33: #{tpu_custom_call.1} parent=5 // pred_check
        _
      $region34: #{tpu_custom_call.1} parent=5 // pred_check_branch
        %203 = sbr.rel (%p200) target = $region36
      $region35: #{tpu_custom_call.1} parent=5 // pred_region
        %s204 = ssub.s32 %s17, 1
        %s205 = sand.u32 %s30, 1
        %s206 = scalar_lea.sflag [#allocation3], %s205
        %s207 = sand.u32 %s30, 1
        %s208 = smul.addr %s207, 4
        %s209 = scalar_lea.vmem [#allocation2], %s208
        // Predicated region
        $region37: #{tpu_custom_call.1} parent=35 // pred_check
          %p210 = pneg %p43
        $region38: #{tpu_custom_call.1} parent=35 // pred_check_branch
          %212 = sbr.rel (%p210) target = $region40
        $region39: #{tpu_custom_call.1} parent=35 // pred_region
          %213 = dma.done %s206, 64
        $region40: #{tpu_custom_call.1} parent=35 // pred_fallthru
          _
        // Predicated region
        $region41: #{tpu_custom_call.1} parent=35 // pred_check
          %p214 = pneg %p64
        $region42: #{tpu_custom_call.1} parent=35 // pred_check_branch
          %216 = sbr.rel (%p214) target = $region44
        $region43: #{tpu_custom_call.1} parent=35 // pred_region
          %217 = dma.done [#allocation6], 256
        $region44: #{tpu_custom_call.1} parent=35 // pred_fallthru
          _
        // Predicated region
        $region45: #{tpu_custom_call.1} parent=35 // pred_check
          %p218 = pneg %p85
        $region46: #{tpu_custom_call.1} parent=35 // pred_check_branch
          %220 = sbr.rel (%p218) target = $region48
        $region47: #{tpu_custom_call.1} parent=35 // pred_region
          %221 = dma.done [#allocation6], 256
        $region48: #{tpu_custom_call.1} parent=35 // pred_fallthru
          _
        %s222 = sand.u32 %s30, 1
        %s223 = scalar_lea.sflag [#allocation3], %s222
        %s224 = sand.u32 %s30, 1
        %s225 = smul.addr %s224, 4
        %s226 = scalar_lea.vmem [#allocation2], %s225
        %p227 = pneg %p43
        %p228 = pneg %p40
        %p229 = pneg %p64
        %p230 = pneg %p61
        %p231 = pneg %p85
        %p232 = pneg %p82
        %p233 = pneg %p106
        %p234 = pneg %p103
        %p235 = pneg %p132
        %p236 = pneg %p129
        %s237 = sand.u32 %s119, 1
        %s238 = scalar_lea.sflag [#allocation4], %s237
        %s239 = sand.u32 %s119, 1
        %s240 = smul.addr %s239, 4
        %s241 = scalar_lea.vmem [#allocation8], %s240
        %v243 = vld [vmem:[%s209] sm:$0xf]
        %v244 = vld [vmem:[#allocation5] sm:$0xf]
        %v245 = vld [vmem:[#allocation5 + $0x4] sm:$0xf]
        %v246 = vld [vmem:[#allocation5 + $0x8] sm:$0xf]
        %v247 = vld [vmem:[#allocation5 + $0xc] sm:$0xf]
        %v252 = vunpack.c.l.b16 %v244
        %v253 = vunpack.c.l.b16 %v245
        %v254 = vunpack.c.l.b16 %v246
        %v255 = vunpack.c.l.b16 %v247
        %v256 = vpack.c.b16 %v253, %v252
        %v257 = vpack.c.b16 %v255, %v254
        %vm260 = vcmask 261120
        %v262 = vsel %vm260, %v243, 0
        %264 = vmatprep.subr.bf16.mxu0 0
        %265 = vmatpush1.bf16.msra.mxu0 %v256
        %266 = vmatprep.subr.bf16.mxu0 0
        %267 = vmatpush1.bf16.msra.mxu0 %v257
        %268 = vmatprep.subr.bf16.mxu0 0
        %269 = vmatpush1.bf16.msra.mxu0 0
        %270 = vmatprep.subr.bf16.mxu0 0
        %271 = vmatpush1.bf16.msra.mxu0 0
        %272 = vmatprep.subr.bf16.mxu0 0
        %273 = vmatpush1.bf16.msra.mxu0 0
        %274 = vmatprep.subr.bf16.mxu0 0
        %275 = vmatpush1.bf16.msra.mxu0 0
        %276 = vmatprep.subr.bf16.mxu0 0
        %277 = vmatpush1.bf16.msra.mxu0 0
        %278 = vmatprep.subr.bf16.mxu0 0
        %279 = vmatpush1.bf16.msra.mxu0 0
        %280 = vmatprep.subr.bf16.mxu0 0
        %281 = vmatpush1.bf16.msra.mxu0 0
        %282 = vmatprep.subr.bf16.mxu0 0
        %283 = vmatpush1.bf16.msra.mxu0 0
        %284 = vmatprep.subr.bf16.mxu0 0
        %285 = vmatpush1.bf16.msra.mxu0 0
        %286 = vmatprep.subr.bf16.mxu0 0
        %287 = vmatpush1.bf16.msra.mxu0 0
        %288 = vmatprep.subr.bf16.mxu0 0
        %289 = vmatpush1.bf16.msra.mxu0 0
        %290 = vmatprep.subr.bf16.mxu0 0
        %291 = vmatpush1.bf16.msra.mxu0 0
        %292 = vmatprep.subr.bf16.mxu0 0
        %293 = vmatpush1.bf16.msra.mxu0 0
        %294 = vmatprep.subr.bf16.mxu0 0
        %295 = vmatpush1.bf16.msra.mxu0 0
        %296 = vmatprep.mubr.bf16.mxu0 0
        %297 = vmatmul.mubr.bf16.gmra.mrb[0].mxu0 %v262
        %v298 = vpop.f32.mrb[0].mxu0
        %v299 = vadd.f32 0.0, %v298
        %v300 = vpop.f32.mrb[0].mxu0
        %v301 = vpop.f32.mrb[0].mxu0
        %v302 = vpop.f32.mrb[0].mxu0
        %303 = vdwg.mxu0
        %v304 = vpack.c.bf16 %v299, %v299
        %306 = vrot.lane.b32.xlu0 %v304, 120
        %v307 = vpop.permute.xlu0 %306
        %308 = vrot.lane.b32.xlu0 %v304, 112
        %v309 = vpop.permute.xlu0 %308
        %310 = vrot.lane.b32.xlu0 %v304, 104
        %v311 = vpop.permute.xlu0 %310
        %v312 = vlaneseq
        %v313 = vshrl.u32 %v312, 7
        %v314 = vlaneseq
        %v315 = vand.u32 %v314, 127
        %vm316 = vcmp.le.s32.totalorder %v315, %v313
        %317 = vrot.lane.b32.xlu0 %v304, 96
        %v318 = vpop.permute.xlu0 %317
        %vm319 = vcmask 64512
        %v321 = vsel %vm319, %v304, 0
        %v324 = vsel %vm319, %v318, 0
        %326 = vmatprep.subr.bf16.mxu0 0
        %327 = vmatpush1.bf16.xpose.msra.mxu0 %v324
        %328 = vmatprep.subr.bf16.mxu0 0
        %329 = vmatpush1.bf16.xpose.msra.mxu0 0
        %330 = vmatprep.subr.bf16.mxu0 0
        %331 = vmatpush1.bf16.xpose.msra.mxu0 0
        %332 = vmatprep.subr.bf16.mxu0 0
        %333 = vmatpush1.bf16.xpose.msra.mxu0 0
        %334 = vmatprep.subr.bf16.mxu0 0
        %335 = vmatpush1.bf16.xpose.msra.mxu0 0
        %336 = vmatprep.subr.bf16.mxu0 0
        %337 = vmatpush1.bf16.xpose.msra.mxu0 0
        %338 = vmatprep.subr.bf16.mxu0 0
        %339 = vmatpush1.bf16.xpose.msra.mxu0 0
        %340 = vmatprep.subr.bf16.mxu0 0
        %341 = vmatpush1.bf16.xpose.msra.mxu0 0
        %342 = vmatprep.subr.bf16.mxu0 0
        %343 = vmatpush1.bf16.xpose.msra.mxu0 0
        %344 = vmatprep.subr.bf16.mxu0 0
        %345 = vmatpush1.bf16.xpose.msra.mxu0 0
        %346 = vmatprep.subr.bf16.mxu0 0
        %347 = vmatpush1.bf16.xpose.msra.mxu0 0
        %348 = vmatprep.subr.bf16.mxu0 0
        %349 = vmatpush1.bf16.xpose.msra.mxu0 0
        %350 = vmatprep.subr.bf16.mxu0 0
        %351 = vmatpush1.bf16.xpose.msra.mxu0 0
        %352 = vmatprep.subr.bf16.mxu0 0
        %353 = vmatpush1.bf16.xpose.msra.mxu0 0
        %354 = vmatprep.subr.bf16.mxu0 0
        %355 = vmatpush1.bf16.xpose.msra.mxu0 0
        %356 = vmatprep.subr.bf16.mxu0 0
        %357 = vmatpush1.bf16.xpose.msra.mxu0 0
        %358 = vmatprep.mubr.bf16.mxu0 0
        %359 = vmatmul.mubr.bf16.gmra.mrb[0].mxu0 %v321
        %v360 = vpop.f32.mrb[0].mxu0
        %v361 = vadd.f32 0.0, %v360
        %v362 = vpop.f32.mrb[0].mxu0
        %v363 = vpop.f32.mrb[0].mxu0
        %v364 = vpop.f32.mrb[0].mxu0
        %365 = vdwg.mxu0
        %366 = vrot.lane.b32.xlu0 %v307, 96
        %v367 = vpop.permute.xlu0 %366
        %v369 = vsel %vm319, %v307, 0
        %v372 = vsel %vm319, %v367, 0
        %374 = vmatprep.subr.bf16.mxu0 0
        %375 = vmatpush1.bf16.xpose.msra.mxu0 %v372
        %376 = vmatprep.subr.bf16.mxu0 0
        %377 = vmatpush1.bf16.xpose.msra.mxu0 0
        %378 = vmatprep.subr.bf16.mxu0 0
        %379 = vmatpush1.bf16.xpose.msra.mxu0 0
        %380 = vmatprep.subr.bf16.mxu0 0
        %381 = vmatpush1.bf16.xpose.msra.mxu0 0
        %382 = vmatprep.subr.bf16.mxu0 0
        %383 = vmatpush1.bf16.xpose.msra.mxu0 0
        %384 = vmatprep.subr.bf16.mxu0 0
        %385 = vmatpush1.bf16.xpose.msra.mxu0 0
        %386 = vmatprep.subr.bf16.mxu0 0
        %387 = vmatpush1.bf16.xpose.msra.mxu0 0
        %388 = vmatprep.subr.bf16.mxu0 0
        %389 = vmatpush1.bf16.xpose.msra.mxu0 0
        %390 = vmatprep.subr.bf16.mxu0 0
        %391 = vmatpush1.bf16.xpose.msra.mxu0 0
        %392 = vmatprep.subr.bf16.mxu0 0
        %393 = vmatpush1.bf16.xpose.msra.mxu0 0
        %394 = vmatprep.subr.bf16.mxu0 0
        %395 = vmatpush1.bf16.xpose.msra.mxu0 0
        %396 = vmatprep.subr.bf16.mxu0 0
        %397 = vmatpush1.bf16.xpose.msra.mxu0 0
        %398 = vmatprep.subr.bf16.mxu0 0
        %399 = vmatpush1.bf16.xpose.msra.mxu0 0
        %400 = vmatprep.subr.bf16.mxu0 0
        %401 = vmatpush1.bf16.xpose.msra.mxu0 0
        %402 = vmatprep.subr.bf16.mxu0 0
        %403 = vmatpush1.bf16.xpose.msra.mxu0 0
        %404 = vmatprep.subr.bf16.mxu0 0
        %405 = vmatpush1.bf16.xpose.msra.mxu0 0
        %406 = vmatprep.mubr.bf16.mxu0 0
        %407 = vmatmul.mubr.bf16.gmra.mrb[0].mxu0 %v369
        %v408 = vpop.f32.mrb[0].mxu0
        %v409 = vadd.f32 0.0, %v408
        %v410 = vpop.f32.mrb[0].mxu0
        %v411 = vpop.f32.mrb[0].mxu0
        %v412 = vpop.f32.mrb[0].mxu0
        %413 = vdwg.mxu0
        %414 = vrot.lane.b32.xlu0 %v309, 96
        %v415 = vpop.permute.xlu0 %414
        %v417 = vsel %vm319, %v309, 0
        %v420 = vsel %vm319, %v415, 0
        %422 = vmatprep.subr.bf16.mxu0 0
        %423 = vmatpush1.bf16.xpose.msra.mxu0 %v420
        %424 = vmatprep.subr.bf16.mxu0 0
        %425 = vmatpush1.bf16.xpose.msra.mxu0 0
        %426 = vmatprep.subr.bf16.mxu0 0
        %427 = vmatpush1.bf16.xpose.msra.mxu0 0
        %428 = vmatprep.subr.bf16.mxu0 0
        %429 = vmatpush1.bf16.xpose.msra.mxu0 0
        %430 = vmatprep.subr.bf16.mxu0 0
        %431 = vmatpush1.bf16.xpose.msra.mxu0 0
        %432 = vmatprep.subr.bf16.mxu0 0
        %433 = vmatpush1.bf16.xpose.msra.mxu0 0
        %434 = vmatprep.subr.bf16.mxu0 0
        %435 = vmatpush1.bf16.xpose.msra.mxu0 0
        %436 = vmatprep.subr.bf16.mxu0 0
        %437 = vmatpush1.bf16.xpose.msra.mxu0 0
        %438 = vmatprep.subr.bf16.mxu0 0
        %439 = vmatpush1.bf16.xpose.msra.mxu0 0
        %440 = vmatprep.subr.bf16.mxu0 0
        %441 = vmatpush1.bf16.xpose.msra.mxu0 0
        %442 = vmatprep.subr.bf16.mxu0 0
        %443 = vmatpush1.bf16.xpose.msra.mxu0 0
        %444 = vmatprep.subr.bf16.mxu0 0
        %445 = vmatpush1.bf16.xpose.msra.mxu0 0
        %446 = vmatprep.subr.bf16.mxu0 0
        %447 = vmatpush1.bf16.xpose.msra.mxu0 0
        %448 = vmatprep.subr.bf16.mxu0 0
        %449 = vmatpush1.bf16.xpose.msra.mxu0 0
        %450 = vmatprep.subr.bf16.mxu0 0
        %451 = vmatpush1.bf16.xpose.msra.mxu0 0
        %452 = vmatprep.subr.bf16.mxu0 0
        %453 = vmatpush1.bf16.xpose.msra.mxu0 0
        %454 = vmatprep.mubr.bf16.mxu0 0
        %455 = vmatmul.mubr.bf16.gmra.mrb[0].mxu0 %v417
        %v456 = vpop.f32.mrb[0].mxu0
        %v457 = vadd.f32 0.0, %v456
        %v458 = vpop.f32.mrb[0].mxu0
        %v459 = vpop.f32.mrb[0].mxu0
        %v460 = vpop.f32.mrb[0].mxu0
        %461 = vdwg.mxu0
        %462 = vrot.lane.b32.xlu0 %v311, 96
        %v463 = vpop.permute.xlu0 %462
        %v465 = vsel %vm319, %v311, 0
        %v468 = vsel %vm319, %v463, 0
        %470 = vmatprep.subr.bf16.mxu0 0
        %471 = vmatpush1.bf16.xpose.msra.mxu0 %v468
        %472 = vmatprep.subr.bf16.mxu0 0
        %473 = vmatpush1.bf16.xpose.msra.mxu0 0
        %474 = vmatprep.subr.bf16.mxu0 0
        %475 = vmatpush1.bf16.xpose.msra.mxu0 0
        %476 = vmatprep.subr.bf16.mxu0 0
        %477 = vmatpush1.bf16.xpose.msra.mxu0 0
        %478 = vmatprep.subr.bf16.mxu0 0
        %479 = vmatpush1.bf16.xpose.msra.mxu0 0
        %480 = vmatprep.subr.bf16.mxu0 0
        %481 = vmatpush1.bf16.xpose.msra.mxu0 0
        %482 = vmatprep.subr.bf16.mxu0 0
        %483 = vmatpush1.bf16.xpose.msra.mxu0 0
        %484 = vmatprep.subr.bf16.mxu0 0
        %485 = vmatpush1.bf16.xpose.msra.mxu0 0
        %486 = vmatprep.subr.bf16.mxu0 0
        %487 = vmatpush1.bf16.xpose.msra.mxu0 0
        %488 = vmatprep.subr.bf16.mxu0 0
        %489 = vmatpush1.bf16.xpose.msra.mxu0 0
        %490 = vmatprep.subr.bf16.mxu0 0
        %491 = vmatpush1.bf16.xpose.msra.mxu0 0
        %492 = vmatprep.subr.bf16.mxu0 0
        %493 = vmatpush1.bf16.xpose.msra.mxu0 0
        %494 = vmatprep.subr.bf16.mxu0 0
        %495 = vmatpush1.bf16.xpose.msra.mxu0 0
        %496 = vmatprep.subr.bf16.mxu0 0
        %497 = vmatpush1.bf16.xpose.msra.mxu0 0
        %498 = vmatprep.subr.bf16.mxu0 0
        %499 = vmatpush1.bf16.xpose.msra.mxu0 0
        %500 = vmatprep.subr.bf16.mxu0 0
        %501 = vmatpush1.bf16.xpose.msra.mxu0 0
        %502 = vmatprep.mubr.bf16.mxu0 0
        %503 = vmatmul.mubr.bf16.gmra.mrb[0].mxu0 %v465
        %v504 = vpop.f32.mrb[0].mxu0
        %v505 = vadd.f32 0.0, %v504
        %v506 = vpop.f32.mrb[0].mxu0
        %v507 = vpop.f32.mrb[0].mxu0
        %v508 = vpop.f32.mrb[0].mxu0
        %509 = vdwg.mxu0
        %v510 = vmul.f32 %v361, 0.35355338
        %v511 = vmul.f32 %v409, 0.35355338
        %v512 = vmul.f32 %v457, 0.35355338
        %v513 = vmul.f32 %v505, 0.35355338
        %v514 = vsel %vm316, 1, 0
        %vm515 = vcmp.eq.s32.totalorder %v514, 1
        %v516 = vsel %vm515, %v510, -1e+30
        %v517 = vsel %vm515, %v511, -1e+30
        %v518 = vsel %vm515, %v512, -1e+30
        %v519 = vsel %vm515, %v513, -1e+30
        %v520 = vsel %vm319, %v516, -inf
        %521 = vmax.xlane.f32.xlu0 %v520
        %v522 = vpop.xlane.xlu0 %521
        %v523 = vsel %vm319, %v517, -inf
        %524 = vmax.xlane.f32.xlu0 %v523
        %v525 = vpop.xlane.xlu0 %524
        %v526 = vsel %vm319, %v518, -inf
        %527 = vmax.xlane.f32.xlu0 %v526
        %v528 = vpop.xlane.xlu0 %527
        %v529 = vsel %vm319, %v519, -inf
        %530 = vmax.xlane.f32.xlu0 %v529
        %v531 = vpop.xlane.xlu0 %530
        %v532 = vsub.f32 %v516, %v522
        %v533 = vsub.f32 %v517, %v525
        %v534 = vsub.f32 %v518, %v528
        %v535 = vsub.f32 %v519, %v531
        %v536 = vmul.f32 %v532, 1.442695
        %v537 = vpow.pop %v536
        %v538 = vmul.f32 %v533, 1.442695
        %v539 = vpow.pop %v538
        %v540 = vmul.f32 %v534, 1.442695
        %v541 = vpow.pop %v540
        %v542 = vmul.f32 %v535, 1.442695
        %v543 = vpow.pop %v542
        %v544 = vsel %vm319, %v537, 0.0
        %545 = vadd.xlane.f32.xlu0 %v544
        %v546 = vpop.xlane.xlu0 %545
        %v547 = vsel %vm319, %v539, 0.0
        %548 = vadd.xlane.f32.xlu0 %v547
        %v549 = vpop.xlane.xlu0 %548
        %v550 = vsel %vm319, %v541, 0.0
        %551 = vadd.xlane.f32.xlu0 %v550
        %v552 = vpop.xlane.xlu0 %551
        %v553 = vsel %vm319, %v543, 0.0
        %554 = vadd.xlane.f32.xlu0 %v553
        %v555 = vpop.xlane.xlu0 %554
        %v556 = vrcp.pop %v546
        %v557 = vrcp.pop %v549
        %v558 = vrcp.pop %v552
        %v559 = vrcp.pop %v555
        %v560 = vmul.f32 %v537, %v556
        %v561 = vmul.f32 %v539, %v557
        %v562 = vmul.f32 %v541, %v558
        %v563 = vmul.f32 %v543, %v559
        %v564 = vpack.c.bf16 %v560, %v560
        %v565 = vpack.c.bf16 %v561, %v561
        %v566 = vpack.c.bf16 %v562, %v562
        %v567 = vpack.c.bf16 %v563, %v563
        %568 = vrot.lane.b32.xlu0 %v304, 64
        %v569 = vpop.permute.xlu0 %568
        %v571 = vsel %vm319, %v564, 0
        %vm573 = vcmask 1043456
        %v575 = vsel %vm573, %v569, 0
        %577 = vmatprep.subr.bf16.mxu0 0
        %578 = vmatpush1.bf16.msra.mxu0 %v575
        %579 = vmatprep.subr.bf16.mxu0 0
        %580 = vmatpush1.bf16.msra.mxu0 0
        %581 = vmatprep.subr.bf16.mxu0 0
        %582 = vmatpush1.bf16.msra.mxu0 0
        %583 = vmatprep.subr.bf16.mxu0 0
        %584 = vmatpush1.bf16.msra.mxu0 0
        %585 = vmatprep.subr.bf16.mxu0 0
        %586 = vmatpush1.bf16.msra.mxu0 0
        %587 = vmatprep.subr.bf16.mxu0 0
        %588 = vmatpush1.bf16.msra.mxu0 0
        %589 = vmatprep.subr.bf16.mxu0 0
        %590 = vmatpush1.bf16.msra.mxu0 0
        %591 = vmatprep.subr.bf16.mxu0 0
        %592 = vmatpush1.bf16.msra.mxu0 0
        %593 = vmatprep.subr.bf16.mxu0 0
        %594 = vmatpush1.bf16.msra.mxu0 0
        %595 = vmatprep.subr.bf16.mxu0 0
        %596 = vmatpush1.bf16.msra.mxu0 0
        %597 = vmatprep.subr.bf16.mxu0 0
        %598 = vmatpush1.bf16.msra.mxu0 0
        %599 = vmatprep.subr.bf16.mxu0 0
        %600 = vmatpush1.bf16.msra.mxu0 0
        %601 = vmatprep.subr.bf16.mxu0 0
        %602 = vmatpush1.bf16.msra.mxu0 0
        %603 = vmatprep.subr.bf16.mxu0 0
        %604 = vmatpush1.bf16.msra.mxu0 0
        %605 = vmatprep.subr.bf16.mxu0 0
        %606 = vmatpush1.bf16.msra.mxu0 0
        %607 = vmatprep.subr.bf16.mxu0 0
        %608 = vmatpush1.bf16.msra.mxu0 0
        %609 = vmatprep.mubr.bf16.mxu0 0
        %610 = vmatmul.mubr.bf16.gmra.mrb[0].mxu0 %v571
        %v611 = vpop.f32.mrb[0].mxu0
        %v612 = vadd.f32 0.0, %v611
        %v613 = vpop.f32.mrb[0].mxu0
        %v614 = vpop.f32.mrb[0].mxu0
        %v615 = vpop.f32.mrb[0].mxu0
        %616 = vdwg.mxu0
        %617 = vrot.lane.b32.xlu0 %v307, 64
        %v618 = vpop.permute.xlu0 %617
        %v620 = vsel %vm319, %v565, 0
        %v623 = vsel %vm573, %v618, 0
        %625 = vmatprep.subr.bf16.mxu0 0
        %626 = vmatpush1.bf16.msra.mxu0 %v623
        %627 = vmatprep.subr.bf16.mxu0 0
        %628 = vmatpush1.bf16.msra.mxu0 0
        %629 = vmatprep.subr.bf16.mxu0 0
        %630 = vmatpush1.bf16.msra.mxu0 0
        %631 = vmatprep.subr.bf16.mxu0 0
        %632 = vmatpush1.bf16.msra.mxu0 0
        %633 = vmatprep.subr.bf16.mxu0 0
        %634 = vmatpush1.bf16.msra.mxu0 0
        %635 = vmatprep.subr.bf16.mxu0 0
        %636 = vmatpush1.bf16.msra.mxu0 0
        %637 = vmatprep.subr.bf16.mxu0 0
        %638 = vmatpush1.bf16.msra.mxu0 0
        %639 = vmatprep.subr.bf16.mxu0 0
        %640 = vmatpush1.bf16.msra.mxu0 0
        %641 = vmatprep.subr.bf16.mxu0 0
        %642 = vmatpush1.bf16.msra.mxu0 0
        %643 = vmatprep.subr.bf16.mxu0 0
        %644 = vmatpush1.bf16.msra.mxu0 0
        %645 = vmatprep.subr.bf16.mxu0 0
        %646 = vmatpush1.bf16.msra.mxu0 0
        %647 = vmatprep.subr.bf16.mxu0 0
        %648 = vmatpush1.bf16.msra.mxu0 0
        %649 = vmatprep.subr.bf16.mxu0 0
        %650 = vmatpush1.bf16.msra.mxu0 0
        %651 = vmatprep.subr.bf16.mxu0 0
        %652 = vmatpush1.bf16.msra.mxu0 0
        %653 = vmatprep.subr.bf16.mxu0 0
        %654 = vmatpush1.bf16.msra.mxu0 0
        %655 = vmatprep.subr.bf16.mxu0 0
        %656 = vmatpush1.bf16.msra.mxu0 0
        %657 = vmatprep.mubr.bf16.mxu0 0
        %658 = vmatmul.mubr.bf16.gmra.mrb[0].mxu0 %v620
        %v659 = vpop.f32.mrb[0].mxu0
        %v660 = vadd.f32 0.0, %v659
        %v661 = vpop.f32.mrb[0].mxu0
        %v662 = vpop.f32.mrb[0].mxu0
        %v663 = vpop.f32.mrb[0].mxu0
        %664 = vdwg.mxu0
        %665 = vrot.lane.b32.xlu0 %v309, 64
        %v666 = vpop.permute.xlu0 %665
        %v668 = vsel %vm319, %v566, 0
        %v671 = vsel %vm573, %v666, 0
        %673 = vmatprep.subr.bf16.mxu0 0
        %674 = vmatpush1.bf16.msra.mxu0 %v671
        %675 = vmatprep.subr.bf16.mxu0 0
        %676 = vmatpush1.bf16.msra.mxu0 0
        %677 = vmatprep.subr.bf16.mxu0 0
        %678 = vmatpush1.bf16.msra.mxu0 0
        %679 = vmatprep.subr.bf16.mxu0 0
        %680 = vmatpush1.bf16.msra.mxu0 0
        %681 = vmatprep.subr.bf16.mxu0 0
        %682 = vmatpush1.bf16.msra.mxu0 0
        %683 = vmatprep.subr.bf16.mxu0 0
        %684 = vmatpush1.bf16.msra.mxu0 0
        %685 = vmatprep.subr.bf16.mxu0 0
        %686 = vmatpush1.bf16.msra.mxu0 0
        %687 = vmatprep.subr.bf16.mxu0 0
        %688 = vmatpush1.bf16.msra.mxu0 0
        %689 = vmatprep.subr.bf16.mxu0 0
        %690 = vmatpush1.bf16.msra.mxu0 0
        %691 = vmatprep.subr.bf16.mxu0 0
        %692 = vmatpush1.bf16.msra.mxu0 0
        %693 = vmatprep.subr.bf16.mxu0 0
        %694 = vmatpush1.bf16.msra.mxu0 0
        %695 = vmatprep.subr.bf16.mxu0 0
        %696 = vmatpush1.bf16.msra.mxu0 0
        %697 = vmatprep.subr.bf16.mxu0 0
        %698 = vmatpush1.bf16.msra.mxu0 0
        %699 = vmatprep.subr.bf16.mxu0 0
        %700 = vmatpush1.bf16.msra.mxu0 0
        %701 = vmatprep.subr.bf16.mxu0 0
        %702 = vmatpush1.bf16.msra.mxu0 0
        %703 = vmatprep.subr.bf16.mxu0 0
        %704 = vmatpush1.bf16.msra.mxu0 0
        %705 = vmatprep.mubr.bf16.mxu0 0
        %706 = vmatmul.mubr.bf16.gmra.mrb[0].mxu0 %v668
        %v707 = vpop.f32.mrb[0].mxu0
        %v708 = vadd.f32 0.0, %v707
        %v709 = vpop.f32.mrb[0].mxu0
        %v710 = vpop.f32.mrb[0].mxu0
        %v711 = vpop.f32.mrb[0].mxu0
        %712 = vdwg.mxu0
        %713 = vrot.lane.b32.xlu0 %v311, 64
        %v714 = vpop.permute.xlu0 %713
        %v716 = vsel %vm319, %v567, 0
        %v719 = vsel %vm573, %v714, 0
        %721 = vmatprep.subr.bf16.mxu0 0
        %722 = vmatpush1.bf16.msra.mxu0 %v719
        %723 = vmatprep.subr.bf16.mxu0 0
        %724 = vmatpush1.bf16.msra.mxu0 0
        %725 = vmatprep.subr.bf16.mxu0 0
        %726 = vmatpush1.bf16.msra.mxu0 0
        %727 = vmatprep.subr.bf16.mxu0 0
        %728 = vmatpush1.bf16.msra.mxu0 0
        %729 = vmatprep.subr.bf16.mxu0 0
        %730 = vmatpush1.bf16.msra.mxu0 0
        %731 = vmatprep.subr.bf16.mxu0 0
        %732 = vmatpush1.bf16.msra.mxu0 0
        %733 = vmatprep.subr.bf16.mxu0 0
        %734 = vmatpush1.bf16.msra.mxu0 0
        %735 = vmatprep.subr.bf16.mxu0 0
        %736 = vmatpush1.bf16.msra.mxu0 0
        %737 = vmatprep.subr.bf16.mxu0 0
        %738 = vmatpush1.bf16.msra.mxu0 0
        %739 = vmatprep.subr.bf16.mxu0 0
        %740 = vmatpush1.bf16.msra.mxu0 0
        %741 = vmatprep.subr.bf16.mxu0 0
        %742 = vmatpush1.bf16.msra.mxu0 0
        %743 = vmatprep.subr.bf16.mxu0 0
        %744 = vmatpush1.bf16.msra.mxu0 0
        %745 = vmatprep.subr.bf16.mxu0 0
        %746 = vmatpush1.bf16.msra.mxu0 0
        %747 = vmatprep.subr.bf16.mxu0 0
        %748 = vmatpush1.bf16.msra.mxu0 0
        %749 = vmatprep.subr.bf16.mxu0 0
        %750 = vmatpush1.bf16.msra.mxu0 0
        %751 = vmatprep.subr.bf16.mxu0 0
        %752 = vmatpush1.bf16.msra.mxu0 0
        %753 = vmatprep.mubr.bf16.mxu0 0
        %754 = vmatmul.mubr.bf16.gmra.mrb[0].mxu0 %v716
        %v755 = vpop.f32.mrb[0].mxu0
        %v756 = vadd.f32 0.0, %v755
        %v757 = vpop.f32.mrb[0].mxu0
        %v758 = vpop.f32.mrb[0].mxu0
        %v759 = vpop.f32.mrb[0].mxu0
        %760 = vdwg.mxu0
        %v761 = vpack.c.bf16 %v612, %v612
        %v762 = vpack.c.bf16 %v660, %v660
        %v763 = vpack.c.bf16 %v708, %v708
        %v764 = vpack.c.bf16 %v756, %v756
        %v765 = vld [vmem:[%s3] sm:$0x1]
        %v767 = vlaneseq
        %v768 = vshrl.u32 %v767, 7
        %v769 = vsub.s32 0, %v768
        %v770 = vrot.slane %v765, %v769
        %v772 = vld [vmem:[#allocation7] sm:$0xf]
        %v774 = vsel %vm319, %v761, 0
        %v777 = vsel %vm573, %v772, 0
        %779 = vmatprep.subr.bf16.mxu0 0
        %780 = vmatpush1.bf16.msra.mxu0 %v777
        %781 = vmatprep.subr.bf16.mxu0 0
        %782 = vmatpush1.bf16.msra.mxu0 0
        %783 = vmatprep.subr.bf16.mxu0 0
        %784 = vmatpush1.bf16.msra.mxu0 0
        %785 = vmatprep.subr.bf16.mxu0 0
        %786 = vmatpush1.bf16.msra.mxu0 0
        %787 = vmatprep.subr.bf16.mxu0 0
        %788 = vmatpush1.bf16.msra.mxu0 0
        %789 = vmatprep.subr.bf16.mxu0 0
        %790 = vmatpush1.bf16.msra.mxu0 0
        %791 = vmatprep.subr.bf16.mxu0 0
        %792 = vmatpush1.bf16.msra.mxu0 0
        %793 = vmatprep.subr.bf16.mxu0 0
        %794 = vmatpush1.bf16.msra.mxu0 0
        %795 = vmatprep.subr.bf16.mxu0 0
        %796 = vmatpush1.bf16.msra.mxu0 0
        %797 = vmatprep.subr.bf16.mxu0 0
        %798 = vmatpush1.bf16.msra.mxu0 0
        %799 = vmatprep.subr.bf16.mxu0 0
        %800 = vmatpush1.bf16.msra.mxu0 0
        %801 = vmatprep.subr.bf16.mxu0 0
        %802 = vmatpush1.bf16.msra.mxu0 0
        %803 = vmatprep.subr.bf16.mxu0 0
        %804 = vmatpush1.bf16.msra.mxu0 0
        %805 = vmatprep.subr.bf16.mxu0 0
        %806 = vmatpush1.bf16.msra.mxu0 0
        %807 = vmatprep.subr.bf16.mxu0 0
        %808 = vmatpush1.bf16.msra.mxu0 0
        %809 = vmatprep.subr.bf16.mxu0 0
        %810 = vmatpush1.bf16.msra.mxu0 0
        %811 = vmatprep.mubr.bf16.mxu0 0
        %812 = vmatmul.mubr.bf16.gmra.mrb[0].mxu0 %v774
        %v813 = vpop.f32.mrb[0].mxu0
        %v814 = vadd.f32 0.0, %v813
        %v815 = vpop.f32.mrb[0].mxu0
        %v816 = vpop.f32.mrb[0].mxu0
        %v817 = vpop.f32.mrb[0].mxu0
        %818 = vdwg.mxu0
        %v819 = vadd.f32 %v770, %v814
        %v820 = vld [vmem:[#allocation7 + $0x4] sm:$0xf]
        %v822 = vsel %vm319, %v762, 0
        %v825 = vsel %vm573, %v820, 0
        %827 = vmatprep.subr.bf16.mxu0 0
        %828 = vmatpush1.bf16.msra.mxu0 %v825
        %829 = vmatprep.subr.bf16.mxu0 0
        %830 = vmatpush1.bf16.msra.mxu0 0
        %831 = vmatprep.subr.bf16.mxu0 0
        %832 = vmatpush1.bf16.msra.mxu0 0
        %833 = vmatprep.subr.bf16.mxu0 0
        %834 = vmatpush1.bf16.msra.mxu0 0
        %835 = vmatprep.subr.bf16.mxu0 0
        %836 = vmatpush1.bf16.msra.mxu0 0
        %837 = vmatprep.subr.bf16.mxu0 0
        %838 = vmatpush1.bf16.msra.mxu0 0
        %839 = vmatprep.subr.bf16.mxu0 0
        %840 = vmatpush1.bf16.msra.mxu0 0
        %841 = vmatprep.subr.bf16.mxu0 0
        %842 = vmatpush1.bf16.msra.mxu0 0
        %843 = vmatprep.subr.bf16.mxu0 0
        %844 = vmatpush1.bf16.msra.mxu0 0
        %845 = vmatprep.subr.bf16.mxu0 0
        %846 = vmatpush1.bf16.msra.mxu0 0
        %847 = vmatprep.subr.bf16.mxu0 0
        %848 = vmatpush1.bf16.msra.mxu0 0
        %849 = vmatprep.subr.bf16.mxu0 0
        %850 = vmatpush1.bf16.msra.mxu0 0
        %851 = vmatprep.subr.bf16.mxu0 0
        %852 = vmatpush1.bf16.msra.mxu0 0
        %853 = vmatprep.subr.bf16.mxu0 0
        %854 = vmatpush1.bf16.msra.mxu0 0
        %855 = vmatprep.subr.bf16.mxu0 0
        %856 = vmatpush1.bf16.msra.mxu0 0
        %857 = vmatprep.subr.bf16.mxu0 0
        %858 = vmatpush1.bf16.msra.mxu0 0
        %859 = vmatprep.mubr.bf16.mxu0 0
        %860 = vmatmul.mubr.bf16.gmra.mrb[0].mxu0 %v822
        %v861 = vpop.f32.mrb[0].mxu0
        %v862 = vadd.f32 0.0, %v861
        %v863 = vpop.f32.mrb[0].mxu0
        %v864 = vpop.f32.mrb[0].mxu0
        %v865 = vpop.f32.mrb[0].mxu0
        %866 = vdwg.mxu0
        %v867 = vadd.f32 %v819, %v862
        %v868 = vld [vmem:[#allocation7 + $0x8] sm:$0xf]
        %v870 = vsel %vm319, %v763, 0
        %v873 = vsel %vm573, %v868, 0
        %875 = vmatprep.subr.bf16.mxu0 0
        %876 = vmatpush1.bf16.msra.mxu0 %v873
        %877 = vmatprep.subr.bf16.mxu0 0
        %878 = vmatpush1.bf16.msra.mxu0 0
        %879 = vmatprep.subr.bf16.mxu0 0
        %880 = vmatpush1.bf16.msra.mxu0 0
        %881 = vmatprep.subr.bf16.mxu0 0
        %882 = vmatpush1.bf16.msra.mxu0 0
        %883 = vmatprep.subr.bf16.mxu0 0
        %884 = vmatpush1.bf16.msra.mxu0 0
        %885 = vmatprep.subr.bf16.mxu0 0
        %886 = vmatpush1.bf16.msra.mxu0 0
        %887 = vmatprep.subr.bf16.mxu0 0
        %888 = vmatpush1.bf16.msra.mxu0 0
        %889 = vmatprep.subr.bf16.mxu0 0
        %890 = vmatpush1.bf16.msra.mxu0 0
        %891 = vmatprep.subr.bf16.mxu0 0
        %892 = vmatpush1.bf16.msra.mxu0 0
        %893 = vmatprep.subr.bf16.mxu0 0
        %894 = vmatpush1.bf16.msra.mxu0 0
        %895 = vmatprep.subr.bf16.mxu0 0
        %896 = vmatpush1.bf16.msra.mxu0 0
        %897 = vmatprep.subr.bf16.mxu0 0
        %898 = vmatpush1.bf16.msra.mxu0 0
        %899 = vmatprep.subr.bf16.mxu0 0
        %900 = vmatpush1.bf16.msra.mxu0 0
        %901 = vmatprep.subr.bf16.mxu0 0
        %902 = vmatpush1.bf16.msra.mxu0 0
        %903 = vmatprep.subr.bf16.mxu0 0
        %904 = vmatpush1.bf16.msra.mxu0 0
        %905 = vmatprep.subr.bf16.mxu0 0
        %906 = vmatpush1.bf16.msra.mxu0 0
        %907 = vmatprep.mubr.bf16.mxu0 0
        %908 = vmatmul.mubr.bf16.gmra.mrb[0].mxu0 %v870
        %v909 = vpop.f32.mrb[0].mxu0
        %v910 = vadd.f32 0.0, %v909
        %v911 = vpop.f32.mrb[0].mxu0
        %v912 = vpop.f32.mrb[0].mxu0
        %v913 = vpop.f32.mrb[0].mxu0
        %914 = vdwg.mxu0
        %v915 = vadd.f32 %v867, %v910
        %v916 = vld [vmem:[#allocation7 + $0xc] sm:$0xf]
        %v918 = vsel %vm319, %v764, 0
        %v921 = vsel %vm573, %v916, 0
        %923 = vmatprep.subr.bf16.mxu0 0
        %924 = vmatpush1.bf16.msra.mxu0 %v921
        %925 = vmatprep.subr.bf16.mxu0 0
        %926 = vmatpush1.bf16.msra.mxu0 0
        %927 = vmatprep.subr.bf16.mxu0 0
        %928 = vmatpush1.bf16.msra.mxu0 0
        %929 = vmatprep.subr.bf16.mxu0 0
        %930 = vmatpush1.bf16.msra.mxu0 0
        %931 = vmatprep.subr.bf16.mxu0 0
        %932 = vmatpush1.bf16.msra.mxu0 0
        %933 = vmatprep.subr.bf16.mxu0 0
        %934 = vmatpush1.bf16.msra.mxu0 0
        %935 = vmatprep.subr.bf16.mxu0 0
        %936 = vmatpush1.bf16.msra.mxu0 0
        %937 = vmatprep.subr.bf16.mxu0 0
        %938 = vmatpush1.bf16.msra.mxu0 0
        %939 = vmatprep.subr.bf16.mxu0 0
        %940 = vmatpush1.bf16.msra.mxu0 0
        %941 = vmatprep.subr.bf16.mxu0 0
        %942 = vmatpush1.bf16.msra.mxu0 0
        %943 = vmatprep.subr.bf16.mxu0 0
        %944 = vmatpush1.bf16.msra.mxu0 0
        %945 = vmatprep.subr.bf16.mxu0 0
        %946 = vmatpush1.bf16.msra.mxu0 0
        %947 = vmatprep.subr.bf16.mxu0 0
        %948 = vmatpush1.bf16.msra.mxu0 0
        %949 = vmatprep.subr.bf16.mxu0 0
        %950 = vmatpush1.bf16.msra.mxu0 0
        %951 = vmatprep.subr.bf16.mxu0 0
        %952 = vmatpush1.bf16.msra.mxu0 0
        %953 = vmatprep.subr.bf16.mxu0 0
        %954 = vmatpush1.bf16.msra.mxu0 0
        %955 = vmatprep.mubr.bf16.mxu0 0
        %956 = vmatmul.mubr.bf16.gmra.mrb[0].mxu0 %v918
        %v957 = vpop.f32.mrb[0].mxu0
        %v958 = vadd.f32 0.0, %v957
        %v959 = vpop.f32.mrb[0].mxu0
        %v960 = vpop.f32.mrb[0].mxu0
        %v961 = vpop.f32.mrb[0].mxu0
        %962 = vdwg.mxu0
        %v963 = vadd.f32 %v915, %v958
        %v964 = vpack.c.bf16 %v963, %v963
        %vm965 = vcmask 257024
        %966 = vst.msk [vmem:[%s241] sm:$0xf] %vm965, %v964
        %s967 = sand.u32 %s119, 1
        %s968 = scalar_lea.sflag [#allocation4], %s967
        %s969 = sand.u32 %s119, 1
        %s970 = smul.addr %s969, 4
        %s971 = scalar_lea.vmem [#allocation8], %s970
        // Predicated region
        $region49: #{tpu_custom_call.1} parent=35 // pred_check
          %p972 = pneg %p129
        $region50: #{tpu_custom_call.1} parent=35 // pred_check_branch
          %974 = sbr.rel (%p972) target = $region52
        $region51: #{tpu_custom_call.1} parent=35 // pred_region
          %s976 = ssub.s32 64, 64
          %977 = vsyncadd %s968, %s976
          %s978 = smul.addr %s22, 64
          %s979 = scalar_lea.hbm %s4, %s978
          %s981 = sshll.u32 %s971, 4
          %s982 = int_to_ptr.vmem [resolvable:$true] %s981
          %984 = dma.vmem_to_hbm [thread:$0]  %s982, 64, %s979, %s968
        $region52: #{tpu_custom_call.1} parent=35 // pred_fallthru
          _
      $region36: #{tpu_custom_call.1} parent=5 // pred_fallthru
        _
      %p985 = scmp.le.s32.totalorder 2, %s17
      // Predicated region
      $region53: #{tpu_custom_call.1} parent=5 // pred_check
        %p986 = pneg %p985
      $region54: #{tpu_custom_call.1} parent=5 // pred_check_branch
        %988 = sbr.rel (%p986) target = $region56
      $region55: #{tpu_custom_call.1} parent=5 // pred_region
        %s989 = ssub.s32 %s17, 2
        // Predicated region
        $region57: #{tpu_custom_call.1} parent=55 // pred_check
          %p990 = pneg %p135
        $region58: #{tpu_custom_call.1} parent=55 // pred_check_branch
          %992 = sbr.rel (%p990) target = $region60
        $region59: #{tpu_custom_call.1} parent=55 // pred_region
          %s993 = sand.u32 %s120, 1
          %s994 = scalar_lea.sflag [#allocation4], %s993
          %s995 = sand.u32 %s120, 1
          %s996 = smul.addr %s995, 4
          %s997 = scalar_lea.vmem [#allocation8], %s996
          %998 = dma.done %s994, 64
        $region60: #{tpu_custom_call.1} parent=55 // pred_fallthru
          _
      $region56: #{tpu_custom_call.1} parent=5 // pred_fallthru
        _
    $region6: #{tpu_custom_call.1} parent=1 // loop_footer
      %s21 = sadd.s32 1, %s17
    $region7: #{tpu_custom_call.1} parent=1 // loop_footer_branch
      %16 = sbr.rel target = $region3
    $region8: #{tpu_custom_call.1} parent=1 // loop_exit
      _
    %999 = vsyncpa [#allocation3], 1
    %s1000 = scalar_lea.sflag [#allocation3], 1
    %1001 = vsyncpa %s1000, 1
    %1002 = vsyncpa [#allocation6], 1
    %1003 = vsyncpa [#allocation4], 1
    %s1004 = scalar_lea.sflag [#allocation4], 1
    %1005 = vsyncpa %s1004, 1

</llo_original>
